<compile_context>
chip_gen: v5e
topology: v5e:2x2
jax: 0.10.0
libtpu: 0.0.40
codegen_flags: <defaults>
</compile_context>

<pallas_src>
import math

import jax
import jax.numpy as jnp
from jax.experimental import pallas as pl
from jax.experimental.pallas import tpu as pltpu


# ----------------------------------------------------------------------------
# Kernel
# ----------------------------------------------------------------------------
def _multivar_linear_kernel(x_ref, w_ref, b_ref, o_ref):
    """One grid step: TN independent linear layers over a TB-row batch block.

    x_ref: (TB, TN*I)    lane-dense slab of x
    w_ref: (TN*I, TN*O)  block-diagonal weight tile (diag block j = weight[j].T)
    b_ref: (1, TN*O)     lane-dense bias tile
    o_ref: (TB, TN*O)    lane-dense output tile
    """
    acc = jnp.dot(x_ref[...], w_ref[...], preferred_element_type=jnp.float32)
    o_ref[...] = (acc + b_ref[...].astype(jnp.float32)).astype(o_ref.dtype)


# ----------------------------------------------------------------------------
# Tiling helpers
# ----------------------------------------------------------------------------
def _round_up(v, m):
    return ((v + m - 1) // m) * m


def _divisors(n):
    return [d for d in range(1, n + 1) if n % d == 0]


def _tile_vmem_bytes(tb, tn, i_dim, o_dim, itemsize, granule):
    """Padded VMEM footprint of one step's tiles (minor dims pad to (granule,128))."""
    x_t = _round_up(tb, granule) * _round_up(tn * i_dim, 128)
    w_t = _round_up(tn * i_dim, granule) * _round_up(tn * o_dim, 128)
    b_t = granule * _round_up(tn * o_dim, 128)
    o_t = _round_up(tb, granule) * _round_up(tn * o_dim, 128)
    return itemsize * (x_t + w_t + b_t + o_t)


def _chip_heuristics():
    """Per-generation (mxu_tile_target, max_tile_bytes, vmem_limit_cap)."""
    try:
        kind = jax.devices()[0].device_kind.lower()
    except Exception:
        kind = ""
    if "v5" in kind:            # 128x128 MXU, 128 MiB physical VMEM
        return 128, 16 << 20, 96 << 20
    if "v6" in kind:            # 256x256 MXU, 128 MiB physical VMEM
        return 256, 16 << 20, 96 << 20
    # v7x (64 MiB VMEM per TC) or unknown generation: be conservative.
    return 256, 8 << 20, 48 << 20


def _pick_tiles(batch, n_nets, i_dim, o_dim, itemsize, granule, mxu, max_tile_bytes):
    """Pick (TN, TB): network-block and batch-block sizes.

    Constraints (the (granule, 128) BlockSpec rules):
      * TN | N and (TN*I and TN*O both multiples of 128, or TN == N)
      * TB | B and (TB multiple of the sublane granule, or TB == B)
    Preference: fits the VMEM tile budget, >= 4 total grid steps, then
    TN*I / TN*O / TB as close to the MXU native tile as possible.
    """
    tn_cands = [d for d in _divisors(n_nets)
                if d == n_nets
                or ((d * i_dim) % 128 == 0 and (d * o_dim) % 128 == 0)]
    tb_cands = [d for d in _divisors(batch) if d == batch or d % granule == 0]

    pairs = [(tn, tb) for tn in tn_cands for tb in tb_cands]
    fitting = [p for p in pairs
               if _tile_vmem_bytes(p[1], p[0], i_dim, o_dim, itemsize, granule)
               <= max_tile_bytes]
    if not fitting:
        # Best effort: smallest footprint (caller sizes vmem_limit from it).
        return min(pairs, key=lambda p: _tile_vmem_bytes(
            p[1], p[0], i_dim, o_dim, itemsize, granule))

    def score(p):
        tn, tb = p
        steps = (n_nets // tn) * (batch // tb)
        mxu_dist = abs(tn * i_dim - mxu) + abs(tn * o_dim - mxu) + abs(tb - mxu)
        return (min(steps, 4), -mxu_dist)

    return max(fitting, key=score)


# ----------------------------------------------------------------------------
# Pallas wrapper (flattened (B, N, I) layout)
# ----------------------------------------------------------------------------
def _multivar_linear_flat_pallas(x, weight, bias):
    """x: (B, N, I), weight: (N, O, I), bias: (N, O) -> (B, N, O) via Pallas."""
    B, N, I = x.shape
    Nw, O, Iw = weight.shape
    assert (N, I) == (Nw, Iw), "shape mismatch between x and weight"
    assert bias.shape == (N, O), "shape mismatch between weight and bias"

    itemsize = jnp.dtype(x.dtype).itemsize
    granule = max(8, 32 // itemsize)            # 8 f32 / 16 bf16 / 32 int8
    mxu, max_tile_bytes, vmem_cap = _chip_heuristics()
    TN, TB = _pick_tiles(B, N, I, O, itemsize, granule, mxu, max_tile_bytes)
    n_n, n_b = N // TN, B // TB

    # Lane-dense slabs (contiguous reshapes, free).
    x_flat = x.reshape(B, N * I)
    bias_flat = bias.reshape(1, N * O)

    # Per-step block-diagonal weight: diagonal block j of step s is
    # weight[s*TN + j].T, so one (TB, TN*I) @ (TN*I, TN*O) matmul applies TN
    # independent layers.  Built once in the wrapper (TN x the raw weight in
    # HBM; cheap whenever B >> O, the typical ENCO regime).
    w_t = jnp.swapaxes(weight, -1, -2).reshape(n_n, TN, I, O)   # (n_n, TN, I, O)
    eye = jnp.eye(TN, dtype=weight.dtype)
    w_bd = jnp.einsum("jk,sjio->sjiko", eye, w_t)               # (n_n, TN, I, TN, O)
    w_bd = w_bd.reshape(n_n * TN * I, TN * O)                   # (N*I, TN*O)

    tile_bytes = _tile_vmem_bytes(TB, TN, I, O, itemsize, granule)
    # Double-buffered tiles + headroom, capped below the per-TC physical VMEM.
    vmem_limit = int(min(vmem_cap, max(16 << 20, 2 * tile_bytes + (4 << 20))))

    out_flat = pl.pallas_call(
        _multivar_linear_kernel,
        out_shape=jax.ShapeDtypeStruct((B, N * O), x.dtype),
        grid_spec=pltpu.PrefetchScalarGridSpec(
            num_scalar_prefetch=0,
            # Batch axis innermost: the weight index_map is independent of it,
            # so each block-diagonal weight tile stays resident across the
            # inner batch loop.
            grid=(n_n, n_b),
            in_specs=[
                pl.BlockSpec((TB, TN * I), lambda n, b: (b, n)),       # x slab
                pl.BlockSpec((TN * I, TN * O), lambda n, b: (n, 0)),   # block-diag W
                pl.BlockSpec((1, TN * O), lambda n, b: (0, n)),        # bias
            ],
            out_specs=pl.BlockSpec((TB, TN * O), lambda n, b: (b, n)),
        ),
        compiler_params=pltpu.CompilerParams(
            dimension_semantics=("parallel", "parallel"),
            vmem_limit_bytes=vmem_limit,
        ),
    )(x_flat, w_bd, bias_flat)

    return out_flat.reshape(B, N, O)


# ----------------------------------------------------------------------------
# Public entry point (mirrors MultivarLinear.forward, incl. broadcast path)
# ----------------------------------------------------------------------------
def multivar_linear(x, weight, bias=None, *, force_pallas=False,
                    einsum_threshold_bytes=256 * 1024):
    """x: (B, *x_extra, I); weight: (*extra, O, I); bias: (*extra, O) -> (B, *extra, O)."""
    *extra, O, I = weight.shape
    extra = tuple(extra)
    B = x.shape[0]
    x_extra = x.shape[1:-1]
    assert x.shape[-1] == I, f"input_dims mismatch: x={x.shape}, I={I}"
    assert len(x_extra) <= len(extra), f"x has too many extra dims: {x.shape}"
    for i in range(len(x_extra)):
        assert x_extra[-(i + 1)] == extra[-(i + 1)], (
            f"Shape mismatch: X={x.shape}, Layer={extra}")

    # PyTorch broadcast path: missing leading extra dims are broadcast.
    missing = len(extra) - len(x_extra)
    if missing:
        x = x.reshape((B,) + (1,) * missing + tuple(x_extra) + (I,))
        x = jnp.broadcast_to(x, (B,) + extra + (I,))

    N = math.prod(extra) if extra else 1
    x_flat = x.reshape(B, N, I)
    w_flat = weight.reshape(N, O, I)
    b_flat = (jnp.zeros((N, O), dtype=weight.dtype) if bias is None
              else bias.reshape(N, O))

    itemsize = jnp.dtype(x.dtype).itemsize
    if not force_pallas and B * N * I * itemsize < einsum_threshold_bytes:
        # Launch overhead of a pallas_call dominates at this size; the fused
        # XLA einsum + bias add is strictly faster on all generations.
        out = (jnp.einsum("noi,bni->bno", w_flat, x_flat) + b_flat[None]).astype(x.dtype)
    else:
        out = _multivar_linear_flat_pallas(x_flat, w_flat, b_flat)

    return out.reshape((B,) + extra + (O,))


def init_params(key, extra_dims, output_dims, input_dims, dtype=jnp.float32):
    """Kaiming-uniform weight (relu gain) like the PyTorch module; small random
    bias to exercise the bias-add path (the module zero-inits it)."""
    k_w, k_b = jax.random.split(key)
    w_shape = tuple(extra_dims) + (output_dims, input_dims)
    fan_in = output_dims * input_dims   # PyTorch fan_in for an (..., O, I) weight
    bound = math.sqrt(2.0) * math.sqrt(3.0 / fan_in)
    weight = jax.random.uniform(k_w, w_shape, dtype=dtype, minval=-bound, maxval=bound)
    bias = 0.1 * jax.random.normal(k_b, tuple(extra_dims) + (output_dims,), dtype=dtype)
    return weight, bias


if __name__ == "__main__":
    key = jax.random.PRNGKey(0)
    k1, k2, k3, k4, k5, k6 = jax.random.split(key, 6)

    # --- Case 1: module's small shape, forced through the Pallas kernel. ---
    batch, extra_dims, input_dims, output_dims = 8, [16], 32, 16
    x = jax.random.normal(k1, (batch, extra_dims[0], input_dims), dtype=jnp.float32)
    w, b = init_params(k2, extra_dims, output_dims, input_dims)
    out = jax.block_until_ready(multivar_linear(x, w, b, force_pallas=True))
    ref = jnp.einsum("noi,bni->bno", w, x) + b[None]
    assert out.shape == (batch, extra_dims[0], output_dims)
    assert jnp.allclose(out, ref, atol=1e-4, rtol=1e-4), \
        f"case 1 max abs err {jnp.max(jnp.abs(out - ref))}"

    # --- Case 2: multi-step grid (blocks over networks AND batch). ---
    batch2, n2 = 64, 32
    x2 = jax.random.normal(k3, (batch2, n2, input_dims), dtype=jnp.float32)
    w2, b2 = init_params(k4, [n2], output_dims, input_dims)
    out2 = jax.block_until_ready(multivar_linear(x2, w2, b2, force_pallas=True))
    ref2 = jnp.einsum("noi,bni->bno", w2, x2) + b2[None]
    assert jnp.allclose(out2, ref2, atol=1e-4, rtol=1e-4), \
        f"case 2 max abs err {jnp.max(jnp.abs(out2 - ref2))}"

    # --- Case 3: PyTorch broadcast path (x missing a leading extra dim);
    # tiny workload -> auto-dispatches to the fused einsum path. ---
    extra3 = (4, 8)
    x3 = jax.random.normal(k5, (batch, extra3[1], input_dims), dtype=jnp.float32)
    w3, b3 = init_params(k6, list(extra3), output_dims, input_dims)
    out3 = jax.block_until_ready(multivar_linear(x3, w3, b3))
    ref3 = jnp.einsum("pqoi,bqi->bpqo", w3, x3) + b3[None]
    assert out3.shape == (batch,) + extra3 + (output_dims,)
    assert jnp.allclose(out3, ref3, atol=1e-4, rtol=1e-4), \
        f"case 3 max abs err {jnp.max(jnp.abs(out3 - ref3))}"

    print("KERNEL_OK")
</pallas_src>

<mosaic_0001>
module attributes {stable_mosaic.version = 11 : i64} {
  func.func @_multivar_linear_kernel(%arg0: i32, %arg1: i32, %arg2: memref<8x256xf32, #tpu.memory_space<vmem>>, %arg3: memref<256x128xf32, #tpu.memory_space<vmem>>, %arg4: memref<1x128xf32, #tpu.memory_space<vmem>>, %arg5: memref<8x128xf32, #tpu.memory_space<vmem>>) attributes {dimension_semantics = [#tpu.dimension_semantics<parallel>, #tpu.dimension_semantics<parallel>], iteration_bounds = array<i64: 2, 1>, scalar_prefetch = 0 : i64, scratch_operands = 0 : i64, tpu.core_type = #tpu.core_type<tc>, window_params = [{transform_indices = @transform_0, window_bounds = array<i64: 8, 256>}, {transform_indices = @transform_1, window_bounds = array<i64: 256, 128>}, {transform_indices = @transform_2, window_bounds = array<i64: 1, 128>}, {transform_indices = @transform_3, window_bounds = array<i64: 8, 128>}]} {
    %c0 = arith.constant 0 : index
    %c0_0 = arith.constant 0 : index
    %0 = vector.load %arg2[%c0, %c0_0] : memref<8x256xf32, #tpu.memory_space<vmem>>, vector<8x256xf32>
    %c0_1 = arith.constant 0 : index
    %c0_2 = arith.constant 0 : index
    %1 = vector.load %arg3[%c0_1, %c0_2] : memref<256x128xf32, #tpu.memory_space<vmem>>, vector<256x128xf32>
    %cst = arith.constant dense<0.000000e+00> : vector<8x128xf32>
    %2 = tpu.matmul %0, %1, %cst {dimension_numbers = #tpu.dot_dimension_numbers<[1], [0], [0], [1], [0, 0, 1, 1], [], []>} : vector<8x256xf32>, vector<256x128xf32>, vector<8x128xf32> -> vector<8x128xf32>
    %c0_3 = arith.constant 0 : index
    %c0_4 = arith.constant 0 : index
    %3 = vector.load %arg4[%c0_3, %c0_4] : memref<1x128xf32, #tpu.memory_space<vmem>>, vector<1x128xf32>
    %4 = vector.broadcast %3 : vector<1x128xf32> to vector<8x128xf32>
    %5 = arith.addf %2, %4 : vector<8x128xf32>
    %c0_5 = arith.constant 0 : index
    %c0_6 = arith.constant 0 : index
    %6 = vector.load %arg5[%c0_5, %c0_6] : memref<8x128xf32, #tpu.memory_space<vmem>>, vector<8x128xf32>
    tpu.vector_store %arg5[%c0_5, %c0_6], %5 {strides = array<i32>} : memref<8x128xf32, #tpu.memory_space<vmem>>, vector<8x128xf32>,
    return
  }
  func.func @transform_0(%arg0: i32, %arg1: i32) -> (i32, i32) {
    %c0_i32 = arith.constant 0 : i32
    return %arg1, %arg0 : i32, i32
  }
  func.func @transform_1(%arg0: i32, %arg1: i32) -> (i32, i32) {
    %c0_i32 = arith.constant 0 : i32
    %c0_i32_0 = arith.constant 0 : i32
    return %arg0, %c0_i32 : i32, i32
  }
  func.func @transform_2(%arg0: i32, %arg1: i32) -> (i32, i32) {
    %c0_i32 = arith.constant 0 : i32
    %c0_i32_0 = arith.constant 0 : i32
    return %c0_i32, %arg0 : i32, i32
  }
  func.func @transform_3(%arg0: i32, %arg1: i32) -> (i32, i32) {
    %c0_i32 = arith.constant 0 : i32
    return %arg1, %arg0 : i32, i32
  }
}

</mosaic_0001>

<llo_original>
// kernel: tpu_custom_call.1
$region0: #{tpu_custom_call.1}
  #allocation0 [shape = 'u32[]', space=smem, size = 0x4, offset = 0x4, fixed_abs, tag = 'smem constant byte address 0x4 - core index']
  #allocation1 [shape = 'u32[72,128]{1,0:T(1,128)}', space=vmem, size = 0x9000, scoped, tag = 'internal scratch']
  %s0 = inlined_call_operand.hbm [shape: f32[8,512], index: 0, kind: input, shape index: {}]
  %s1 = inlined_call_operand.hbm [shape: f32[512,128], index: 1, kind: input, shape index: {}]
  %s2 = inlined_call_operand.hbm [shape: f32[1,256], index: 2, kind: input, shape index: {}]
  %s3 = inlined_call_operand.hbm [shape: f32[8,256], index: 3, kind: output, shape index: {}]
  %s4 = sld [smem:[#allocation0]]
  $region57: #{tpu_custom_call.1} parent=0
    _
  %s6 = ssub.s32 1, %s4
  %s7 = scalar_select 0, %s6, %s4
  $region1: #{tpu_custom_call.1} parent=0
    #allocation2 [shape = 'u8[16384]{0}', space=vmem, size = 0x4000, scoped, tag = 'input window, operand 0']
    #allocation3 [shape = 's32[2]{0}', space=sflag, size = 0x8, scoped, tag = 'scoped memory for tpu_custom_call.1']
    #allocation4 [shape = 's32[2]{0}', space=sflag, size = 0x8, scoped, tag = 'scoped memory for tpu_custom_call.1']
    #allocation5 [shape = 'u8[262144]{0}', space=vmem, size = 0x40000, scoped, tag = 'input window, operand 1']
    #allocation6 [shape = 's32[2]{0}', space=sflag, size = 0x8, scoped, tag = 'scoped memory for tpu_custom_call.1']
    #allocation7 [shape = 'u8[1024]{0}', space=vmem, size = 0x400, scoped, tag = 'input window, operand 2']
    #allocation8 [shape = 'u8[8192]{0}', space=vmem, size = 0x2000, scoped, tag = 'output window, operand 0']
    %8 = vsyncpa [#allocation3], 0
    %s9 = scalar_lea.sflag [#allocation3], 1
    %10 = vsyncpa %s9, 0
    %11 = vsyncpa [#allocation6], 0
    %s12 = scalar_lea.sflag [#allocation6], 1
    %13 = vsyncpa %s12, 0
    %14 = vsyncpa [#allocation4], 0
    %s15 = scalar_lea.sflag [#allocation4], 1
    %16 = vsyncpa %s15, 0
    loop: start=0, step=1, limit=4
    $region2: #{tpu_custom_call.1} parent=1 // loop_pre_header
      _
    $region3: #{tpu_custom_call.1} parent=1 // loop_header
      %s18 = sphi 0, %s22
      %p19 = scmp.ge.s32.totalorder %s18, 4
      %s25 = sphi 0, %s37
      %s26 = sphi 0, %s33
      %s27 = sphi 0, %s25
      %s28 = sphi 0, %s26
      %s29 = sphi 0, %s27
      %s30 = sphi 0, %s28
      %s42 = sphi 0, %s44
      %s45 = sphi 0, %s42
      %s46 = sphi 0, %s45
      %s62 = sphi 0, %s46
      %s68 = sphi 0, %s70
      %s71 = sphi 0, %s68
      %s72 = sphi 0, %s71
      %s88 = sphi 0, %s72
      %s94 = sphi 0, %s96
      %s97 = sphi 0, %s94
      %s98 = sphi 0, %s97
      %s114 = sphi 0, %s98
      %s122 = sphi 0, %s124
      %s125 = sphi 0, %s122
      %s126 = sphi 0, %s125
      %s142 = sphi 0, %s126
    $region4: #{tpu_custom_call.1} parent=1 // loop_header_branch
      %21 = sbr.rel (%p19) target = $region8
    $region5: #{tpu_custom_call.1} parent=1 // loop_body
      %s23 = ssub.s32 %s18, 1
      %s24 = ssub.s32 %s18, 2
      %s31 = sadd.s32 1, %s26
      %p32 = scmp.ge.s32.totalorder %s31, 1
      %s33 = scalar_select %p32, 0, %s31
      %s34 = sadd.s32 1, %s25
      %s35 = scalar_select %p32, %s34, %s25
      %p36 = scmp.ge.s32.totalorder %s35, 2
      %s37 = scalar_select %p36, 0, %s35
      %s38 = ssub.s32 %s26, %s33
      %s39 = ssub.s32 %s25, %s37
      %s40 = sor.u32 %s38, %s39
      %p41 = scmp.eq.s32.totalorder %s40, 0
      %s43 = sadd.s32 %s42, 1
      %s44 = scalar_select %p41, %s42, %s43
      %p47 = pneg %p41
      %p48 = scmp.eq.s32.totalorder %s18, 1
      %p49 = por %p47, %p48
      %p50 = scmp.ne.s32.totalorder %s42, %s45
      %p51 = scmp.eq.s32.totalorder %s18, 0
      %p52 = por %p50, %p51
      %p53 = scmp.ne.s32.totalorder %s42, %s45
      %p54 = scmp.eq.s32.totalorder %s23, 1
      %p55 = por %p53, %p54
      %p56 = scmp.ne.s32.totalorder %s45, %s46
      %p57 = scmp.eq.s32.totalorder %s23, 0
      %p58 = por %p56, %p57
      %p59 = scmp.ne.s32.totalorder %s45, %s46
      %p60 = scmp.eq.s32.totalorder %s24, 1
      %p61 = por %p59, %p60
      %p63 = scmp.ne.s32.totalorder %s46, %s62
      %p64 = scmp.eq.s32.totalorder %s24, 0
      %p65 = por %p63, %p64
      %s66 = ssub.s32 %s25, %s37
      %p67 = scmp.eq.s32.totalorder %s66, 0
      %s69 = sadd.s32 %s68, 1
      %s70 = scalar_select %p67, %s68, %s69
      %p73 = pneg %p67
      %p74 = scmp.eq.s32.totalorder %s18, 1
      %p75 = por %p73, %p74
      %p76 = scmp.ne.s32.totalorder %s68, %s71
      %p77 = scmp.eq.s32.totalorder %s18, 0
      %p78 = por %p76, %p77
      %p79 = scmp.ne.s32.totalorder %s68, %s71
      %p80 = scmp.eq.s32.totalorder %s23, 1
      %p81 = por %p79, %p80
      %p82 = scmp.ne.s32.totalorder %s71, %s72
      %p83 = scmp.eq.s32.totalorder %s23, 0
      %p84 = por %p82, %p83
      %p85 = scmp.ne.s32.totalorder %s71, %s72
      %p86 = scmp.eq.s32.totalorder %s24, 1
      %p87 = por %p85, %p86
      %p89 = scmp.ne.s32.totalorder %s72, %s88
      %p90 = scmp.eq.s32.totalorder %s24, 0
      %p91 = por %p89, %p90
      %s92 = ssub.s32 %s25, %s37
      %p93 = scmp.eq.s32.totalorder %s92, 0
      %s95 = sadd.s32 %s94, 1
      %s96 = scalar_select %p93, %s94, %s95
      %p99 = pneg %p93
      %p100 = scmp.eq.s32.totalorder %s18, 1
      %p101 = por %p99, %p100
      %p102 = scmp.ne.s32.totalorder %s94, %s97
      %p103 = scmp.eq.s32.totalorder %s18, 0
      %p104 = por %p102, %p103
      %p105 = scmp.ne.s32.totalorder %s94, %s97
      %p106 = scmp.eq.s32.totalorder %s23, 1
      %p107 = por %p105, %p106
      %p108 = scmp.ne.s32.totalorder %s97, %s98
      %p109 = scmp.eq.s32.totalorder %s23, 0
      %p110 = por %p108, %p109
      %p111 = scmp.ne.s32.totalorder %s97, %s98
      %p112 = scmp.eq.s32.totalorder %s24, 1
      %p113 = por %p111, %p112
      %p115 = scmp.ne.s32.totalorder %s98, %s114
      %p116 = scmp.eq.s32.totalorder %s24, 0
      %p117 = por %p115, %p116
      %s118 = ssub.s32 %s26, %s33
      %s119 = ssub.s32 %s25, %s37
      %s120 = sor.u32 %s118, %s119
      %p121 = scmp.eq.s32.totalorder %s120, 0
      %s123 = sadd.s32 %s122, 1
      %s124 = scalar_select %p121, %s122, %s123
      %p127 = pneg %p121
      %p128 = scmp.eq.s32.totalorder %s18, 1
      %p129 = por %p127, %p128
      %p130 = scmp.ne.s32.totalorder %s122, %s125
      %p131 = scmp.eq.s32.totalorder %s18, 0
      %p132 = por %p130, %p131
      %p133 = scmp.ne.s32.totalorder %s122, %s125
      %p134 = scmp.eq.s32.totalorder %s23, 1
      %p135 = por %p133, %p134
      %p136 = scmp.ne.s32.totalorder %s125, %s126
      %p137 = scmp.eq.s32.totalorder %s23, 0
      %p138 = por %p136, %p137
      %p139 = scmp.ne.s32.totalorder %s125, %s126
      %p140 = scmp.eq.s32.totalorder %s24, 1
      %p141 = por %p139, %p140
      %p143 = scmp.ne.s32.totalorder %s126, %s142
      %p144 = scmp.eq.s32.totalorder %s24, 0
      %p145 = por %p143, %p144
      %p146 = scmp.le.s32.totalorder 1, %s18
      %p147 = scmp.lt.s32.totalorder %s18, 3
      %p148 = pnand %p146, %p147
      %p149 = pneg %p148
      // Predicated region
      $region9: #{tpu_custom_call.1} parent=5 // pred_check
        _
      $region10: #{tpu_custom_call.1} parent=5 // pred_check_branch
        %151 = sbr.rel (%p148) target = $region12
      $region11: #{tpu_custom_call.1} parent=5 // pred_region
        %s152 = ssub.s32 %s18, 1
      $region12: #{tpu_custom_call.1} parent=5 // pred_fallthru
        _
      %p153 = scmp.lt.s32.totalorder %s18, 2
      // Predicated region
      $region13: #{tpu_custom_call.1} parent=5 // pred_check
        %p154 = pneg %p153
      $region14: #{tpu_custom_call.1} parent=5 // pred_check_branch
        %156 = sbr.rel (%p154) target = $region16
      $region15: #{tpu_custom_call.1} parent=5 // pred_region
        // Predicated region
        $region17: #{tpu_custom_call.1} parent=15 // pred_check
          %p157 = pneg %p52
        $region18: #{tpu_custom_call.1} parent=15 // pred_check_branch
          %159 = sbr.rel (%p157) target = $region20
        $region19: #{tpu_custom_call.1} parent=15 // pred_region
          %s160 = sand.u32 %s42, 1
          %s161 = scalar_lea.sflag [#allocation3], %s160
          %s162 = sand.u32 %s42, 1
          %s163 = smul.addr %s162, 16
          %s164 = scalar_lea.vmem [#allocation2], %s163
          %s165 = smul.u32 2, %s25
          %167 = vsyncadd %s161, 0
          %s168 = smul.addr %s26, 4
          %s169 = sadd.s32 %s165, %s168
          %s170 = smul.addr %s169, 8
          %s171 = scalar_lea.hbm %s0, %s170
          %s173 = sshll.u32 %s171, 4
          %s174 = int_to_ptr.hbm [resolvable:$true] %s173
          %s175 = sshll.u32 %s164, 4
          %s176 = int_to_ptr.vmem [resolvable:$true] %s175
          %178 = dma.hbm_to_vmem [thread:$0]  %s174, 256, %s176, %s161
        $region20: #{tpu_custom_call.1} parent=15 // pred_fallthru
          _
        // Predicated region
        $region21: #{tpu_custom_call.1} parent=15 // pred_check
          %p179 = pneg %p78
        $region22: #{tpu_custom_call.1} parent=15 // pred_check_branch
          %181 = sbr.rel (%p179) target = $region24
        $region23: #{tpu_custom_call.1} parent=15 // pred_region
          %s182 = sand.u32 %s18, 1
          %s183 = scalar_lea.sflag [#allocation6], %s182
          %s184 = sand.u32 %s68, 1
          %s185 = smul.addr %s184, 256
          %s186 = scalar_lea.vmem [#allocation5], %s185
          %s187 = smul.u32 32, %s25
          %189 = vsyncadd %s183, 0
          %s190 = smul.addr %s187, 8
          %s191 = scalar_lea.hbm %s1, %s190
          %s192 = sshll.u32 %s191, 4
          %s193 = int_to_ptr.hbm [resolvable:$true] %s192
          %s194 = sshll.u32 %s186, 4
          %s195 = int_to_ptr.vmem [resolvable:$true] %s194
          %200 = dma.hbm_to_vmem [thread:$0]  %s193, 4096, %s195, %s183, 128, 128, 8
        $region24: #{tpu_custom_call.1} parent=15 // pred_fallthru
          _
        // Predicated region
        $region25: #{tpu_custom_call.1} parent=15 // pred_check
          %p201 = pneg %p104
        $region26: #{tpu_custom_call.1} parent=15 // pred_check_branch
          %203 = sbr.rel (%p201) target = $region28
        $region27: #{tpu_custom_call.1} parent=15 // pred_region
          %s204 = sand.u32 %s18, 1
          %s205 = scalar_lea.sflag [#allocation6], %s204
          %s206 = sand.u32 %s94, 1
          %s207 = scalar_lea.vmem [#allocation7], %s206
          %209 = vsyncadd %s205, 0
          %s210 = scalar_lea.hbm %s2, %s25
          %s212 = sshll.u32 %s210, 4
          %s213 = int_to_ptr.hbm [resolvable:$true] %s212
          %s214 = sshll.u32 %s207, 4
          %s215 = int_to_ptr.vmem [resolvable:$true] %s214
          %217 = dma.hbm_to_vmem [thread:$0]  %s213, 16, %s215, %s205
        $region28: #{tpu_custom_call.1} parent=15 // pred_fallthru
          _
      $region16: #{tpu_custom_call.1} parent=5 // pred_fallthru
        _
      %p218 = scmp.le.s32.totalorder 1, %s18
      %p219 = scmp.lt.s32.totalorder %s18, 3
      %p220 = pnand %p218, %p219
      %p221 = pneg %p220
      // Predicated region
      $region29: #{tpu_custom_call.1} parent=5 // pred_check
        _
      $region30: #{tpu_custom_call.1} parent=5 // pred_check_branch
        %223 = sbr.rel (%p220) target = $region32
      $region31: #{tpu_custom_call.1} parent=5 // pred_region
        %s224 = ssub.s32 %s18, 1
        %s225 = sand.u32 %s45, 1
        %s226 = scalar_lea.sflag [#allocation3], %s225
        %s227 = sand.u32 %s45, 1
        %s228 = smul.addr %s227, 16
        %s229 = scalar_lea.vmem [#allocation2], %s228
        // Predicated region
        $region33: #{tpu_custom_call.1} parent=31 // pred_check
          %p230 = pneg %p58
        $region34: #{tpu_custom_call.1} parent=31 // pred_check_branch
          %232 = sbr.rel (%p230) target = $region36
        $region35: #{tpu_custom_call.1} parent=31 // pred_region
          %234 = dma.done %s226, 256
        $region36: #{tpu_custom_call.1} parent=31 // pred_fallthru
          _
        %s235 = sand.u32 %s23, 1
        %s236 = scalar_lea.sflag [#allocation6], %s235
        %s237 = sand.u32 %s71, 1
        %s238 = smul.addr %s237, 256
        %s239 = scalar_lea.vmem [#allocation5], %s238
        // Predicated region
        $region37: #{tpu_custom_call.1} parent=31 // pred_check
          %p240 = pneg %p84
        $region38: #{tpu_custom_call.1} parent=31 // pred_check_branch
          %242 = sbr.rel (%p240) target = $region40
        $region39: #{tpu_custom_call.1} parent=31 // pred_region
          %244 = dma.done %s236, 4096
        $region40: #{tpu_custom_call.1} parent=31 // pred_fallthru
          _
        %s245 = sand.u32 %s23, 1
        %s246 = scalar_lea.sflag [#allocation6], %s245
        %s247 = sand.u32 %s97, 1
        %s248 = scalar_lea.vmem [#allocation7], %s247
        // Predicated region
        $region41: #{tpu_custom_call.1} parent=31 // pred_check
          %p249 = pneg %p110
        $region42: #{tpu_custom_call.1} parent=31 // pred_check_branch
          %251 = sbr.rel (%p249) target = $region44
        $region43: #{tpu_custom_call.1} parent=31 // pred_region
          %253 = dma.done %s246, 16
        $region44: #{tpu_custom_call.1} parent=31 // pred_fallthru
          _
        %s254 = sand.u32 %s45, 1
        %s255 = scalar_lea.sflag [#allocation3], %s254
        %s256 = sand.u32 %s45, 1
        %s257 = smul.addr %s256, 16
        %s258 = scalar_lea.vmem [#allocation2], %s257
        %p259 = pneg %p58
        %p260 = pneg %p55
        %s261 = sand.u32 %s23, 1
        %s262 = scalar_lea.sflag [#allocation6], %s261
        %s263 = sand.u32 %s71, 1
        %s264 = smul.addr %s263, 256
        %s265 = scalar_lea.vmem [#allocation5], %s264
        %p266 = pneg %p84
        %p267 = pneg %p81
        %s268 = sand.u32 %s23, 1
        %s269 = scalar_lea.sflag [#allocation6], %s268
        %s270 = sand.u32 %s97, 1
        %s271 = scalar_lea.vmem [#allocation7], %s270
        %p272 = pneg %p110
        %p273 = pneg %p107
        %p274 = pneg %p138
        %p275 = pneg %p135
        %s276 = sand.u32 %s125, 1
        %s277 = scalar_lea.sflag [#allocation4], %s276
        %s278 = sand.u32 %s125, 1
        %s279 = smul.addr %s278, 8
        %s280 = scalar_lea.vmem [#allocation8], %s279
        %s281 = smul.u32 2, %s27
        %s282 = smul.u32 32, %s27
        %v283 = vld [vmem:[%s229] sm:$0xff]
        %v284 = vld [vmem:[%s229 + $0x8] sm:$0xff]
        %v285 = vld [vmem:[%s239] sm:$0xff]
        %v286 = vld [vmem:[%s239 + $0x8] sm:$0xff]
        %v287 = vld [vmem:[%s239 + $0x10] sm:$0xff]
        %v288 = vld [vmem:[%s239 + $0x18] sm:$0xff]
        %v289 = vld [vmem:[%s239 + $0x20] sm:$0xff]
        %v290 = vld [vmem:[%s239 + $0x28] sm:$0xff]
        %v291 = vld [vmem:[%s239 + $0x30] sm:$0xff]
        %v292 = vld [vmem:[%s239 + $0x38] sm:$0xff]
        %v293 = vld [vmem:[%s239 + $0x40] sm:$0xff]
        %v294 = vld [vmem:[%s239 + $0x48] sm:$0xff]
        %v295 = vld [vmem:[%s239 + $0x50] sm:$0xff]
        %v296 = vld [vmem:[%s239 + $0x58] sm:$0xff]
        %v297 = vld [vmem:[%s239 + $0x60] sm:$0xff]
        %v298 = vld [vmem:[%s239 + $0x68] sm:$0xff]
        %v299 = vld [vmem:[%s239 + $0x70] sm:$0xff]
        %v300 = vld [vmem:[%s239 + $0x78] sm:$0xff]
        %v301 = vld [vmem:[%s239 + $0x80] sm:$0xff]
        %v302 = vld [vmem:[%s239 + $0x88] sm:$0xff]
        %v303 = vld [vmem:[%s239 + $0x90] sm:$0xff]
        %v304 = vld [vmem:[%s239 + $0x98] sm:$0xff]
        %v305 = vld [vmem:[%s239 + $0xa0] sm:$0xff]
        %v306 = vld [vmem:[%s239 + $0xa8] sm:$0xff]
        %v307 = vld [vmem:[%s239 + $0xb0] sm:$0xff]
        %v308 = vld [vmem:[%s239 + $0xb8] sm:$0xff]
        %v309 = vld [vmem:[%s239 + $0xc0] sm:$0xff]
        %v310 = vld [vmem:[%s239 + $0xc8] sm:$0xff]
        %v311 = vld [vmem:[%s239 + $0xd0] sm:$0xff]
        %v312 = vld [vmem:[%s239 + $0xd8] sm:$0xff]
        %v313 = vld [vmem:[%s239 + $0xe0] sm:$0xff]
        %v314 = vld [vmem:[%s239 + $0xe8] sm:$0xff]
        %v315 = vld [vmem:[%s239 + $0xf0] sm:$0xff]
        %v316 = vld [vmem:[%s239 + $0xf8] sm:$0xff]
        %v317 = vld [vmem:[%s248] sm:$0x1]
        %v319 = vperm.slane %v317, 0
        %321 = vmatpush.msra.mxu0 %v300
        %322 = vmatpush.msra.mxu0 %v299
        %323 = vmatpush.msra.mxu0 %v298
        %324 = vmatpush.msra.mxu0 %v297
        %325 = vmatpush.msra.mxu0 %v296
        %326 = vmatpush.msra.mxu0 %v295
        %327 = vmatpush.msra.mxu0 %v294
        %328 = vmatpush.msra.mxu0 %v293
        %329 = vmatpush.msra.mxu0 %v292
        %330 = vmatpush.msra.mxu0 %v291
        %331 = vmatpush.msra.mxu0 %v290
        %332 = vmatpush.msra.mxu0 %v289
        %333 = vmatpush.msra.mxu0 %v288
        %334 = vmatpush.msra.mxu0 %v287
        %335 = vmatpush.msra.mxu0 %v286
        %336 = vmatpush.msra.mxu0 %v285
        %337 = vmatmul.f32.gmra.mxu0 %v283
        %v338 = vpop.f32.mrf.mxu0
        %v339 = vadd.f32 %v319, %v338
        %340 = vdwg.mxu0
        %341 = vmatpush.msra.mxu0 %v316
        %342 = vmatpush.msra.mxu0 %v315
        %343 = vmatpush.msra.mxu0 %v314
        %344 = vmatpush.msra.mxu0 %v313
        %345 = vmatpush.msra.mxu0 %v312
        %346 = vmatpush.msra.mxu0 %v311
        %347 = vmatpush.msra.mxu0 %v310
        %348 = vmatpush.msra.mxu0 %v309
        %349 = vmatpush.msra.mxu0 %v308
        %350 = vmatpush.msra.mxu0 %v307
        %351 = vmatpush.msra.mxu0 %v306
        %352 = vmatpush.msra.mxu0 %v305
        %353 = vmatpush.msra.mxu0 %v304
        %354 = vmatpush.msra.mxu0 %v303
        %355 = vmatpush.msra.mxu0 %v302
        %356 = vmatpush.msra.mxu0 %v301
        %357 = vmatmul.f32.gmra.mxu0 %v284
        %v358 = vpop.f32.mrf.mxu0
        %v359 = vadd.f32 %v339, %v358
        %360 = vdwg.mxu0
        %361 = vst [vmem:[%s280] sm:$0xff] %v359
        %s362 = sand.u32 %s125, 1
        %s363 = scalar_lea.sflag [#allocation4], %s362
        %s364 = sand.u32 %s125, 1
        %s365 = smul.addr %s364, 8
        %s366 = scalar_lea.vmem [#allocation8], %s365
        // Predicated region
        $region45: #{tpu_custom_call.1} parent=31 // pred_check
          %p367 = pneg %p135
        $region46: #{tpu_custom_call.1} parent=31 // pred_check_branch
          %369 = sbr.rel (%p367) target = $region48
        $region47: #{tpu_custom_call.1} parent=31 // pred_region
          %371 = vsyncadd %s363, 0
          %s372 = smul.addr %s28, 2
          %s373 = sadd.s32 %s27, %s372
          %s374 = smul.addr %s373, 8
          %s375 = scalar_lea.hbm %s3, %s374
          %s377 = sshll.u32 %s366, 4
          %s378 = int_to_ptr.vmem [resolvable:$true] %s377
          %s379 = sshll.u32 %s375, 4
          %s380 = int_to_ptr.hbm [resolvable:$true] %s379
          %382 = dma.vmem_to_hbm [thread:$0]  %s378, 128, %s380, %s363
        $region48: #{tpu_custom_call.1} parent=31 // pred_fallthru
          _
      $region32: #{tpu_custom_call.1} parent=5 // pred_fallthru
        _
      %p383 = scmp.le.s32.totalorder 2, %s18
      // Predicated region
      $region49: #{tpu_custom_call.1} parent=5 // pred_check
        %p384 = pneg %p383
      $region50: #{tpu_custom_call.1} parent=5 // pred_check_branch
        %386 = sbr.rel (%p384) target = $region52
      $region51: #{tpu_custom_call.1} parent=5 // pred_region
        %s387 = ssub.s32 %s18, 2
        // Predicated region
        $region53: #{tpu_custom_call.1} parent=51 // pred_check
          %p388 = pneg %p141
        $region54: #{tpu_custom_call.1} parent=51 // pred_check_branch
          %390 = sbr.rel (%p388) target = $region56
        $region55: #{tpu_custom_call.1} parent=51 // pred_region
          %s391 = sand.u32 %s126, 1
          %s392 = scalar_lea.sflag [#allocation4], %s391
          %s393 = sand.u32 %s126, 1
          %s394 = smul.addr %s393, 8
          %s395 = scalar_lea.vmem [#allocation8], %s394
          %397 = dma.done %s392, 128
        $region56: #{tpu_custom_call.1} parent=51 // pred_fallthru
          _
      $region52: #{tpu_custom_call.1} parent=5 // pred_fallthru
        _
    $region6: #{tpu_custom_call.1} parent=1 // loop_footer
      %s22 = sadd.s32 1, %s18
    $region7: #{tpu_custom_call.1} parent=1 // loop_footer_branch
      %17 = sbr.rel target = $region3
    $region8: #{tpu_custom_call.1} parent=1 // loop_exit
      _
    %398 = vsyncpa [#allocation3], 1
    %s399 = scalar_lea.sflag [#allocation3], 1
    %400 = vsyncpa %s399, 1
    %401 = vsyncpa [#allocation6], 1
    %s402 = scalar_lea.sflag [#allocation6], 1
    %403 = vsyncpa %s402, 1
    %404 = vsyncpa [#allocation4], 1
    %s405 = scalar_lea.sflag [#allocation4], 1
    %406 = vsyncpa %s405, 1

</llo_original>
